<compile_context>
chip_gen: v6e
topology: v6e:2x2x1
jax: 0.10.0
libtpu: 0.0.40
codegen_flags: <defaults>
</compile_context>

<pallas_src>
import functools
import math

import numpy as np
import jax
import jax.numpy as jnp
from jax import lax
from jax.experimental import pallas as pl
from jax.experimental.pallas import tpu as pltpu


def _round_up(a: int, b: int) -> int:
    return ((a + b - 1) // b) * b


def _vmem_limit_bytes() -> int:
    """Generation-aware scoped-VMEM limit with headroom (v5e/v6e: 96 MiB, v7x: 48 MiB)."""
    cap = 64 * 1024 * 1024
    try:
        info = pltpu.get_tpu_info()
        cap = int(getattr(info, "vmem_capacity_bytes", cap))
    except Exception:
        pass
    return max(16 * 1024 * 1024, min(cap * 3 // 4, 96 * 1024 * 1024))


def _prenorm2_kernel(*refs, eps: float, d: int, k: int, fused_fn):
    """LayerNorm (biased var, eps inside rsqrt — matches nn.LayerNorm) of two tiles.

    Tiles are (tile_rows, k*d): each kernel row holds k logical rows of length d laid
    out contiguously along the lane axis (k == 1 means plain layout).  When k > 1 the
    per-logical-row mean/var are computed with tiny MXU segment-reduction matmuls
    (seg_sum / seg_bcast passed in as resident VMEM constants).
    If fused_fn is given, the kernel emits fused_fn(ln(x), ln(x2)) as a single output.
    """
    if k > 1:
        x_ref, x2_ref, w_ref, b_ref, ssum_ref, sbc_ref = refs[:6]
        out_refs = refs[6:]
        seg_sum = ssum_ref[...]      # (k*d, k) f32
        seg_bcast = sbc_ref[...]     # (k, k*d) f32
    else:
        x_ref, x2_ref, w_ref, b_ref = refs[:4]
        out_refs = refs[4:]
        seg_sum = seg_bcast = None

    w = w_ref[...].astype(jnp.float32)   # (1, k*d), already tiled k times in wrapper
    b = b_ref[...].astype(jnp.float32)
    inv_d = 1.0 / float(d)

    def layernorm(x):
        x = x.astype(jnp.float32)
        if k > 1:
            mean = jnp.dot(
                jnp.dot(x, seg_sum, preferred_element_type=jnp.float32) * inv_d,
                seg_bcast, preferred_element_type=jnp.float32)
            xc = x - mean
            var = jnp.dot(
                jnp.dot(xc * xc, seg_sum, preferred_element_type=jnp.float32) * inv_d,
                seg_bcast, preferred_element_type=jnp.float32)
        else:
            mean = jnp.mean(x, axis=-1, keepdims=True)
            xc = x - mean
            var = jnp.mean(xc * xc, axis=-1, keepdims=True)   # biased var (PyTorch LN)
        return xc * lax.rsqrt(var + eps) * w + b              # rsqrt -> EUP slot

    n1 = layernorm(x_ref[...])
    n2 = layernorm(x2_ref[...])
    if fused_fn is not None:
        out_refs[0][...] = fused_fn(n1, n2).astype(out_refs[0].dtype)
    else:
        out_refs[0][...] = n1.astype(out_refs[0].dtype)
        out_refs[1][...] = n2.astype(out_refs[1].dtype)


def fused_prenorm2_layernorm(x, x2, weight, bias, *, eps: float = 1e-5,
                             elementwise_fn=None,
                             target_block_bytes: int = 2 * 1024 * 1024):
    """Apply the same LayerNorm (over the last dim) to x and x2 in one pallas_call.

    If elementwise_fn is given, returns elementwise_fn(ln(x), ln(x2)) computed in-kernel
    (single output); otherwise returns (ln(x), ln(x2)).
    """
    assert x.shape == x2.shape, "x and x2 must share a shape"
    orig_shape = x.shape
    d = int(orig_shape[-1])
    rows = int(math.prod(orig_shape[:-1])) if len(orig_shape) > 1 else 1

    # Lane-packing factor: fold k logical rows into one kernel row of k*d lanes.
    # k*d is a multiple of 128 for any d < 128; reduce k until it divides rows so the
    # packing is a free reshape (no padding, no extra HBM pass).
    k = 128 // math.gcd(d, 128) if d < 128 else 1
    while k > 1 and rows % k != 0:
        k //= 2
    dk = d * k
    packed_rows = rows // k

    # Sublane alignment per dtype (take the stricter of the two inputs).
    itemsize = max(jnp.dtype(x.dtype).itemsize, jnp.dtype(x2.dtype).itemsize)
    sub = {4: 8, 2: 16, 1: 32}.get(itemsize, 8)

    # VMEM budget: 4 I/O blocks double-buffered (native dtype) + ~6 f32 intermediates.
    vmem_limit = _vmem_limit_bytes()
    bytes_per_row = dk * (4 * 2 * itemsize + 6 * 4)
    max_rows_vmem = max(sub, ((vmem_limit // 2) // bytes_per_row) // sub * sub)
    target_rows = max(sub, (target_block_bytes // (dk * itemsize)) // sub * sub)
    tile_rows = min(target_rows, max_rows_vmem)

    if packed_rows > 2 * sub:
        # Keep >= 2 grid steps so the "parallel" axis can use both v7x TensorCores.
        tile_rows = min(tile_rows, _round_up(-(-packed_rows // 2), sub))
    if tile_rows >= packed_rows:
        tile_rows = packed_rows            # single exact block, no OOB at all

    grid = (pl.cdiv(packed_rows, tile_rows),)   # ragged tail masked by Pallas

    # Pure metadata reshapes (row-major, same element count) — no data movement.
    xp = x.reshape(packed_rows, dk)
    x2p = x2.reshape(packed_rows, dk)
    wp = jnp.tile(weight.reshape(-1), (k,)).reshape(1, dk)
    bp = jnp.tile(bias.reshape(-1), (k,)).reshape(1, dk)

    inputs = [xp, x2p, wp, bp]
    in_specs = [
        pl.BlockSpec((tile_rows, dk), lambda i: (i, 0)),
        pl.BlockSpec((tile_rows, dk), lambda i: (i, 0)),
        pl.BlockSpec((1, dk), lambda i: (0, 0)),
        pl.BlockSpec((1, dk), lambda i: (0, 0)),
    ]
    if k > 1:
        # Segment-reduction constants built once (host-side), resident across the grid.
        seg_ids = np.arange(dk, dtype=np.int32) // d
        seg_sum = (seg_ids[:, None] == np.arange(k, dtype=np.int32)[None, :]
                   ).astype(np.float32)                      # (dk, k)
        inputs += [jnp.asarray(seg_sum), jnp.asarray(seg_sum.T)]
        in_specs += [pl.BlockSpec((dk, k), lambda i: (0, 0)),
                     pl.BlockSpec((k, dk), lambda i: (0, 0))]

    if elementwise_fn is not None:
        out_dtype = jnp.result_type(x.dtype, x2.dtype)
        out_shape = jax.ShapeDtypeStruct((packed_rows, dk), out_dtype)
        out_specs = pl.BlockSpec((tile_rows, dk), lambda i: (i, 0))
    else:
        out_shape = (jax.ShapeDtypeStruct((packed_rows, dk), x.dtype),
                     jax.ShapeDtypeStruct((packed_rows, dk), x2.dtype))
        out_specs = [pl.BlockSpec((tile_rows, dk), lambda i: (i, 0)),
                     pl.BlockSpec((tile_rows, dk), lambda i: (i, 0))]

    result = pl.pallas_call(
        functools.partial(_prenorm2_kernel, eps=eps, d=d, k=k,
                          fused_fn=elementwise_fn),
        out_shape=out_shape,
        grid_spec=pltpu.PrefetchScalarGridSpec(
            num_scalar_prefetch=0,
            grid=grid,
            in_specs=in_specs,
            out_specs=out_specs,
        ),
        compiler_params=pltpu.CompilerParams(
            dimension_semantics=("parallel",),
            vmem_limit_bytes=int(vmem_limit),
        ),
    )(*inputs)

    if elementwise_fn is not None:
        return result.reshape(orig_shape)
    o1, o2 = result
    return o1.reshape(orig_shape), o2.reshape(orig_shape)


class PreNorm2:
    """JAX/Pallas port of PreNorm2: fn(norm(x), norm(x2), **kwargs), shared LayerNorm.

    fuse_fn=True additionally fuses fn into the kernel tail; this is only valid when fn
    is an elementwise, shape-preserving function of the two normalized tensors.
    """

    def __init__(self, dim, fn, weight=None, bias=None, eps: float = 1e-5,
                 fuse_fn: bool = False):
        self.dim = dim
        self.fn = fn
        self.weight = jnp.ones((dim,), jnp.float32) if weight is None else weight
        self.bias = jnp.zeros((dim,), jnp.float32) if bias is None else bias
        self.eps = eps
        self.fuse_fn = fuse_fn

    def __call__(self, x, x2, **kwargs):
        if self.fuse_fn and not kwargs:
            return fused_prenorm2_layernorm(x, x2, self.weight, self.bias,
                                            eps=self.eps, elementwise_fn=self.fn)
        nx, nx2 = fused_prenorm2_layernorm(x, x2, self.weight, self.bias, eps=self.eps)
        return self.fn(nx, nx2, **kwargs)


def _reference_layernorm(x, weight, bias, eps=1e-5):
    mean = jnp.mean(x, axis=-1, keepdims=True)
    var = jnp.mean((x - mean) ** 2, axis=-1, keepdims=True)
    return (x - mean) / jnp.sqrt(var + eps) * weight + bias


if __name__ == "__main__":
    key = jax.random.PRNGKey(0)
    kx, kx2, kw, kb = jax.random.split(key, 4)

    def add_fn(a, b, **kwargs):
        return a + b

    # --- Test 1: narrow D=32 (lane-packed, k=4); general path and fn-fused path ---
    B, S, D = 2, 8, 32
    x = jax.random.normal(kx, (B, S, D), dtype=jnp.float32)
    x2 = jax.random.normal(kx2, (B, S, D), dtype=jnp.float32)
    w = 1.0 + 0.1 * jax.random.normal(kw, (D,), dtype=jnp.float32)
    b = 0.1 * jax.random.normal(kb, (D,), dtype=jnp.float32)
    ref = add_fn(_reference_layernorm(x, w, b), _reference_layernorm(x2, w, b))

    out = jax.block_until_ready(PreNorm2(D, add_fn, w, b)(x, x2))
    assert out.shape == (B, S, D)
    assert jnp.max(jnp.abs(out - ref)) < 1e-4, "mismatch (D=32, general path)"

    out_f = jax.block_until_ready(PreNorm2(D, add_fn, w, b, fuse_fn=True)(x, x2))
    assert jnp.max(jnp.abs(out_f - ref)) < 1e-4, "mismatch (D=32, fused-fn path)"

    # --- Test 2: wide D=256 (plain layout, k=1) ---
    D2 = 256
    xw = jax.random.normal(kx, (B, S, D2), dtype=jnp.float32)
    x2w = jax.random.normal(kx2, (B, S, D2), dtype=jnp.float32)
    w2 = 1.0 + 0.1 * jax.random.normal(kw, (D2,), dtype=jnp.float32)
    b2 = 0.1 * jax.random.normal(kb, (D2,), dtype=jnp.float32)
    ref2 = add_fn(_reference_layernorm(xw, w2, b2), _reference_layernorm(x2w, w2, b2))
    out2 = jax.block_until_ready(PreNorm2(D2, add_fn, w2, b2)(xw, x2w))
    assert jnp.max(jnp.abs(out2 - ref2)) < 1e-4, "mismatch (D=256)"

    # --- Test 3: D=48 (not a divisor of 128 -> generalized packing, k=8, dk=384) ---
    D3 = 48
    x3 = jax.random.normal(kx, (B, S, D3), dtype=jnp.float32)
    x23 = jax.random.normal(kx2, (B, S, D3), dtype=jnp.float32)
    w3 = 1.0 + 0.1 * jax.random.normal(kw, (D3,), dtype=jnp.float32)
    b3 = 0.1 * jax.random.normal(kb, (D3,), dtype=jnp.float32)
    ref3 = add_fn(_reference_layernorm(x3, w3, b3), _reference_layernorm(x23, w3, b3))
    out3 = jax.block_until_ready(PreNorm2(D3, add_fn, w3, b3, fuse_fn=True)(x3, x23))
    assert jnp.max(jnp.abs(out3 - ref3)) < 1e-4, "mismatch (D=48, packed+fused)"

    # --- Test 4: ragged rows (69 rows, odd -> k=1) exercising cdiv boundary masking ---
    B4, S4, D4 = 3, 23, 64
    x4 = jax.random.normal(kx, (B4, S4, D4), dtype=jnp.float32)
    x24 = jax.random.normal(kx2, (B4, S4, D4), dtype=jnp.float32)
    w4 = 1.0 + 0.1 * jax.random.normal(kw, (D4,), dtype=jnp.float32)
    b4 = 0.1 * jax.random.normal(kb, (D4,), dtype=jnp.float32)
    ref4 = add_fn(_reference_layernorm(x4, w4, b4), _reference_layernorm(x24, w4, b4))
    out4 = jax.block_until_ready(PreNorm2(D4, add_fn, w4, b4)(x4, x24))
    assert out4.shape == (B4, S4, D4)
    assert jnp.max(jnp.abs(out4 - ref4)) < 1e-4, "mismatch (ragged rows)"

    print("KERNEL_OK")
</pallas_src>

<mosaic_0001>
module attributes {stable_mosaic.version = 11 : i64} {
  func.func @_prenorm2_kernel(%arg0: i32, %arg1: memref<4x128xf32, #tpu.memory_space<vmem>>, %arg2: memref<4x128xf32, #tpu.memory_space<vmem>>, %arg3: memref<1x128xf32, #tpu.memory_space<vmem>>, %arg4: memref<1x128xf32, #tpu.memory_space<vmem>>, %arg5: memref<128x4xf32, #tpu.memory_space<vmem>>, %arg6: memref<4x128xf32, #tpu.memory_space<vmem>>, %arg7: memref<4x128xf32, #tpu.memory_space<vmem>>, %arg8: memref<4x128xf32, #tpu.memory_space<vmem>>) attributes {dimension_semantics = [#tpu.dimension_semantics<parallel>], iteration_bounds = array<i64: 1>, scalar_prefetch = 0 : i64, scratch_operands = 0 : i64, tpu.core_type = #tpu.core_type<tc>, window_params = [{transform_indices = @transform_0, window_bounds = array<i64: 4, 128>}, {transform_indices = @transform_1, window_bounds = array<i64: 4, 128>}, {pipeline_mode = #tpu.pipeline_mode<synchronous>, transform_indices = @transform_2, window_bounds = array<i64: 1, 128>}, {pipeline_mode = #tpu.pipeline_mode<synchronous>, transform_indices = @transform_3, window_bounds = array<i64: 1, 128>}, {pipeline_mode = #tpu.pipeline_mode<synchronous>, transform_indices = @transform_4, window_bounds = array<i64: 128, 4>}, {pipeline_mode = #tpu.pipeline_mode<synchronous>, transform_indices = @transform_5, window_bounds = array<i64: 4, 128>}, {transform_indices = @transform_6, window_bounds = array<i64: 4, 128>}, {transform_indices = @transform_7, window_bounds = array<i64: 4, 128>}]} {
    %c0 = arith.constant 0 : index
    %c0_0 = arith.constant 0 : index
    %0 = vector.load %arg5[%c0, %c0_0] : memref<128x4xf32, #tpu.memory_space<vmem>>, vector<128x4xf32>
    %c0_1 = arith.constant 0 : index
    %c0_2 = arith.constant 0 : index
    %1 = vector.load %arg6[%c0_1, %c0_2] : memref<4x128xf32, #tpu.memory_space<vmem>>, vector<4x128xf32>
    %c0_3 = arith.constant 0 : index
    %c0_4 = arith.constant 0 : index
    %2 = vector.load %arg3[%c0_3, %c0_4] : memref<1x128xf32, #tpu.memory_space<vmem>>, vector<1x128xf32>
    %c0_5 = arith.constant 0 : index
    %c0_6 = arith.constant 0 : index
    %3 = vector.load %arg4[%c0_5, %c0_6] : memref<1x128xf32, #tpu.memory_space<vmem>>, vector<1x128xf32>
    %c0_7 = arith.constant 0 : index
    %c0_8 = arith.constant 0 : index
    %4 = vector.load %arg1[%c0_7, %c0_8] : memref<4x128xf32, #tpu.memory_space<vmem>>, vector<4x128xf32>
    %cst = arith.constant dense<0.000000e+00> : vector<4x4xf32>
    %5 = tpu.matmul %4, %0, %cst {dimension_numbers = #tpu.dot_dimension_numbers<[1], [0], [0], [1], [0, 0, 1, 1], [], []>} : vector<4x128xf32>, vector<128x4xf32>, vector<4x4xf32> -> vector<4x4xf32>
    %cst_9 = arith.constant 3.125000e-02 : f32
    %6 = vector.broadcast %cst_9 : f32 to vector<4x4xf32>
    %7 = arith.mulf %5, %6 : vector<4x4xf32>
    %cst_10 = arith.constant dense<0.000000e+00> : vector<4x128xf32>
    %8 = tpu.matmul %7, %1, %cst_10 {dimension_numbers = #tpu.dot_dimension_numbers<[1], [0], [0], [1], [0, 0, 1, 1], [], []>} : vector<4x4xf32>, vector<4x128xf32>, vector<4x128xf32> -> vector<4x128xf32>
    %9 = arith.subf %4, %8 : vector<4x128xf32>
    %10 = arith.mulf %9, %9 : vector<4x128xf32>
    %cst_11 = arith.constant dense<0.000000e+00> : vector<4x4xf32>
    %11 = tpu.matmul %10, %0, %cst_11 {dimension_numbers = #tpu.dot_dimension_numbers<[1], [0], [0], [1], [0, 0, 1, 1], [], []>} : vector<4x128xf32>, vector<128x4xf32>, vector<4x4xf32> -> vector<4x4xf32>
    %cst_12 = arith.constant 3.125000e-02 : f32
    %12 = vector.broadcast %cst_12 : f32 to vector<4x4xf32>
    %13 = arith.mulf %11, %12 : vector<4x4xf32>
    %cst_13 = arith.constant dense<0.000000e+00> : vector<4x128xf32>
    %14 = tpu.matmul %13, %1, %cst_13 {dimension_numbers = #tpu.dot_dimension_numbers<[1], [0], [0], [1], [0, 0, 1, 1], [], []>} : vector<4x4xf32>, vector<4x128xf32>, vector<4x128xf32> -> vector<4x128xf32>
    %cst_14 = arith.constant 9.99999974E-6 : f32
    %15 = vector.broadcast %cst_14 : f32 to vector<4x128xf32>
    %16 = arith.addf %14, %15 : vector<4x128xf32>
    %17 = math.rsqrt %16 : vector<4x128xf32>
    %18 = arith.mulf %9, %17 : vector<4x128xf32>
    %19 = vector.broadcast %2 : vector<1x128xf32> to vector<4x128xf32>
    %20 = arith.mulf %18, %19 : vector<4x128xf32>
    %21 = vector.broadcast %3 : vector<1x128xf32> to vector<4x128xf32>
    %22 = arith.addf %20, %21 : vector<4x128xf32>
    %c0_15 = arith.constant 0 : index
    %c0_16 = arith.constant 0 : index
    %23 = vector.load %arg2[%c0_15, %c0_16] : memref<4x128xf32, #tpu.memory_space<vmem>>, vector<4x128xf32>
    %cst_17 = arith.constant dense<0.000000e+00> : vector<4x4xf32>
    %24 = tpu.matmul %23, %0, %cst_17 {dimension_numbers = #tpu.dot_dimension_numbers<[1], [0], [0], [1], [0, 0, 1, 1], [], []>} : vector<4x128xf32>, vector<128x4xf32>, vector<4x4xf32> -> vector<4x4xf32>
    %cst_18 = arith.constant 3.125000e-02 : f32
    %25 = vector.broadcast %cst_18 : f32 to vector<4x4xf32>
    %26 = arith.mulf %24, %25 : vector<4x4xf32>
    %cst_19 = arith.constant dense<0.000000e+00> : vector<4x128xf32>
    %27 = tpu.matmul %26, %1, %cst_19 {dimension_numbers = #tpu.dot_dimension_numbers<[1], [0], [0], [1], [0, 0, 1, 1], [], []>} : vector<4x4xf32>, vector<4x128xf32>, vector<4x128xf32> -> vector<4x128xf32>
    %28 = arith.subf %23, %27 : vector<4x128xf32>
    %29 = arith.mulf %28, %28 : vector<4x128xf32>
    %cst_20 = arith.constant dense<0.000000e+00> : vector<4x4xf32>
    %30 = tpu.matmul %29, %0, %cst_20 {dimension_numbers = #tpu.dot_dimension_numbers<[1], [0], [0], [1], [0, 0, 1, 1], [], []>} : vector<4x128xf32>, vector<128x4xf32>, vector<4x4xf32> -> vector<4x4xf32>
    %cst_21 = arith.constant 3.125000e-02 : f32
    %31 = vector.broadcast %cst_21 : f32 to vector<4x4xf32>
    %32 = arith.mulf %30, %31 : vector<4x4xf32>
    %cst_22 = arith.constant dense<0.000000e+00> : vector<4x128xf32>
    %33 = tpu.matmul %32, %1, %cst_22 {dimension_numbers = #tpu.dot_dimension_numbers<[1], [0], [0], [1], [0, 0, 1, 1], [], []>} : vector<4x4xf32>, vector<4x128xf32>, vector<4x128xf32> -> vector<4x128xf32>
    %cst_23 = arith.constant 9.99999974E-6 : f32
    %34 = vector.broadcast %cst_23 : f32 to vector<4x128xf32>
    %35 = arith.addf %33, %34 : vector<4x128xf32>
    %36 = math.rsqrt %35 : vector<4x128xf32>
    %37 = arith.mulf %28, %36 : vector<4x128xf32>
    %38 = vector.broadcast %2 : vector<1x128xf32> to vector<4x128xf32>
    %39 = arith.mulf %37, %38 : vector<4x128xf32>
    %40 = vector.broadcast %3 : vector<1x128xf32> to vector<4x128xf32>
    %41 = arith.addf %39, %40 : vector<4x128xf32>
    %c0_24 = arith.constant 0 : index
    %c0_25 = arith.constant 0 : index
    %42 = vector.load %arg7[%c0_24, %c0_25] : memref<4x128xf32, #tpu.memory_space<vmem>>, vector<4x128xf32>
    tpu.vector_store %arg7[%c0_24, %c0_25], %22 {strides = array<i32>} : memref<4x128xf32, #tpu.memory_space<vmem>>, vector<4x128xf32>,
    %c0_26 = arith.constant 0 : index
    %c0_27 = arith.constant 0 : index
    %43 = vector.load %arg8[%c0_26, %c0_27] : memref<4x128xf32, #tpu.memory_space<vmem>>, vector<4x128xf32>
    tpu.vector_store %arg8[%c0_26, %c0_27], %41 {strides = array<i32>} : memref<4x128xf32, #tpu.memory_space<vmem>>, vector<4x128xf32>,
    return
  }
  func.func @transform_0(%arg0: i32) -> (i32, i32) {
    %c0_i32 = arith.constant 0 : i32
    %c0_i32_0 = arith.constant 0 : i32
    return %arg0, %c0_i32 : i32, i32
  }
  func.func @transform_1(%arg0: i32) -> (i32, i32) {
    %c0_i32 = arith.constant 0 : i32
    %c0_i32_0 = arith.constant 0 : i32
    return %arg0, %c0_i32 : i32, i32
  }
  func.func @transform_2(%arg0: i32) -> (i32, i32) {
    %c0_i32 = arith.constant 0 : i32
    %c0_i32_0 = arith.constant 0 : i32
    %c0_i32_1 = arith.constant 0 : i32
    return %c0_i32, %c0_i32_0 : i32, i32
  }
  func.func @transform_3(%arg0: i32) -> (i32, i32) {
    %c0_i32 = arith.constant 0 : i32
    %c0_i32_0 = arith.constant 0 : i32
    %c0_i32_1 = arith.constant 0 : i32
    return %c0_i32, %c0_i32_0 : i32, i32
  }
  func.func @transform_4(%arg0: i32) -> (i32, i32) {
    %c0_i32 = arith.constant 0 : i32
    %c0_i32_0 = arith.constant 0 : i32
    %c0_i32_1 = arith.constant 0 : i32
    return %c0_i32, %c0_i32_0 : i32, i32
  }
  func.func @transform_5(%arg0: i32) -> (i32, i32) {
    %c0_i32 = arith.constant 0 : i32
    %c0_i32_0 = arith.constant 0 : i32
    %c0_i32_1 = arith.constant 0 : i32
    return %c0_i32, %c0_i32_0 : i32, i32
  }
  func.func @transform_6(%arg0: i32) -> (i32, i32) {
    %c0_i32 = arith.constant 0 : i32
    %c0_i32_0 = arith.constant 0 : i32
    return %arg0, %c0_i32 : i32, i32
  }
  func.func @transform_7(%arg0: i32) -> (i32, i32) {
    %c0_i32 = arith.constant 0 : i32
    %c0_i32_0 = arith.constant 0 : i32
    return %arg0, %c0_i32 : i32, i32
  }
}

</mosaic_0001>

<llo_original>
// kernel: tpu_custom_call.1
$region0: #{tpu_custom_call.1}
  #allocation0 [shape = 'u32[]', space=smem, size = 0x4, offset = 0x4, fixed_abs, tag = 'smem constant byte address 0x4 - core index']
  #allocation1 [shape = 'u32[144,128]{1,0:T(1,128)}', space=vmem, size = 0x12000, scoped, tag = 'internal scratch']
  %s0 = inlined_call_operand.vmem [shape: f32[4,128], index: 0, kind: input, shape index: {}]
  %s1 = inlined_call_operand.vmem [shape: f32[4,128], index: 1, kind: input, shape index: {}]
  %s2 = inlined_call_operand.vmem [shape: f32[1,128], index: 2, kind: input, shape index: {}]
  %s3 = inlined_call_operand.vmem [shape: f32[1,128], index: 3, kind: input, shape index: {}]
  %s4 = inlined_call_operand.vmem [shape: f32[128,4], index: 4, kind: input, shape index: {}]
  %s5 = inlined_call_operand.vmem [shape: f32[4,128], index: 5, kind: input, shape index: {}]
  %s6 = inlined_call_operand.hbm [shape: f32[4,128], index: 6, kind: output, shape index: {0}]
  %s7 = inlined_call_operand.hbm [shape: f32[4,128], index: 7, kind: output, shape index: {1}]
  %8 = xla_tuple %s6, %s7
  %s9 = sld [smem:[#allocation0]]
  $region42: #{tpu_custom_call.1} parent=0
    _
  %s11 = ssub.s32 1, %s9
  %s12 = scalar_select 0, %s11, %s9
  $region1: #{tpu_custom_call.1} parent=0
    #allocation2 [shape = 'u8[2048]{0}', space=vmem, size = 0x800, scoped, tag = 'output window, operand 0, single buffered']
    #allocation3 [shape = 's32[1]{0}', space=sflag, size = 0x4, scoped, tag = 'scoped memory for tpu_custom_call.1']
    #allocation4 [shape = 'u8[2048]{0}', space=vmem, size = 0x800, scoped, tag = 'output window, operand 1, single buffered']
    #allocation5 [shape = 's32[1]{0}', space=sflag, size = 0x4, scoped, tag = 'scoped memory for tpu_custom_call.1']
    %13 = vsyncpa [#allocation3], 0
    %14 = vsyncpa [#allocation5], 0
    // Predicated region
    $region2: #{tpu_custom_call.1} parent=1 // pred_check
      _
    $region3: #{tpu_custom_call.1} parent=1 // pred_check_branch
      %16 = sbr.rel (0) target = $region5
    $region4: #{tpu_custom_call.1} parent=1 // pred_region
      _
    $region5: #{tpu_custom_call.1} parent=1 // pred_fallthru
      _
    // Predicated region
    $region6: #{tpu_custom_call.1} parent=1 // pred_check
      _
    $region7: #{tpu_custom_call.1} parent=1 // pred_check_branch
      %18 = sbr.rel (0) target = $region9
    $region8: #{tpu_custom_call.1} parent=1 // pred_region
      _
    $region9: #{tpu_custom_call.1} parent=1 // pred_fallthru
      _
    // Predicated region
    $region10: #{tpu_custom_call.1} parent=1 // pred_check
      _
    $region11: #{tpu_custom_call.1} parent=1 // pred_check_branch
      %20 = sbr.rel (0) target = $region13
    $region12: #{tpu_custom_call.1} parent=1 // pred_region
      _
    $region13: #{tpu_custom_call.1} parent=1 // pred_fallthru
      _
    // Predicated region
    $region14: #{tpu_custom_call.1} parent=1 // pred_check
      _
    $region15: #{tpu_custom_call.1} parent=1 // pred_check_branch
      %22 = sbr.rel (0) target = $region17
    $region16: #{tpu_custom_call.1} parent=1 // pred_region
      _
    $region17: #{tpu_custom_call.1} parent=1 // pred_fallthru
      _
    // Predicated region
    $region18: #{tpu_custom_call.1} parent=1 // pred_check
      _
    $region19: #{tpu_custom_call.1} parent=1 // pred_check_branch
      %24 = sbr.rel (0) target = $region21
    $region20: #{tpu_custom_call.1} parent=1 // pred_region
      _
    $region21: #{tpu_custom_call.1} parent=1 // pred_fallthru
      _
    // Predicated region
    $region22: #{tpu_custom_call.1} parent=1 // pred_check
      _
    $region23: #{tpu_custom_call.1} parent=1 // pred_check_branch
      %26 = sbr.rel (0) target = $region25
    $region24: #{tpu_custom_call.1} parent=1 // pred_region
      _
    $region25: #{tpu_custom_call.1} parent=1 // pred_fallthru
      _
    %v27 = vld [vmem:[%s4] sm:$0xff]
    %v28 = vld [vmem:[%s4 + $0x8] sm:$0xff]
    %v29 = vld [vmem:[%s4 + $0x10] sm:$0xff]
    %v30 = vld [vmem:[%s4 + $0x18] sm:$0xff]
    %v31 = vld [vmem:[%s4 + $0x20] sm:$0xff]
    %v32 = vld [vmem:[%s4 + $0x28] sm:$0xff]
    %v33 = vld [vmem:[%s4 + $0x30] sm:$0xff]
    %v34 = vld [vmem:[%s4 + $0x38] sm:$0xff]
    %v35 = vld [vmem:[%s4 + $0x40] sm:$0xff]
    %v36 = vld [vmem:[%s4 + $0x48] sm:$0xff]
    %v37 = vld [vmem:[%s4 + $0x50] sm:$0xff]
    %v38 = vld [vmem:[%s4 + $0x58] sm:$0xff]
    %v39 = vld [vmem:[%s4 + $0x60] sm:$0xff]
    %v40 = vld [vmem:[%s4 + $0x68] sm:$0xff]
    %v41 = vld [vmem:[%s4 + $0x70] sm:$0xff]
    %v42 = vld [vmem:[%s4 + $0x78] sm:$0xff]
    %v43 = vld [vmem:[%s5] sm:$0xf]
    %v44 = vld [vmem:[%s2] sm:$0x1]
    %v45 = vld [vmem:[%s3] sm:$0x1]
    %v46 = vld [vmem:[%s0] sm:$0xf]
    %47 = vmatprep.subr.mxu0 0.0
    %48 = vmatpush1.msra.mxu0 %v42
    %49 = vmatprep.subr.mxu0 0.0
    %50 = vmatpush1.msra.mxu0 %v41
    %51 = vmatprep.subr.mxu0 0.0
    %52 = vmatpush1.msra.mxu0 %v40
    %53 = vmatprep.subr.mxu0 0.0
    %54 = vmatpush1.msra.mxu0 %v39
    %55 = vmatprep.subr.mxu0 0.0
    %56 = vmatpush1.msra.mxu0 %v38
    %57 = vmatprep.subr.mxu0 0.0
    %58 = vmatpush1.msra.mxu0 %v37
    %59 = vmatprep.subr.mxu0 0.0
    %60 = vmatpush1.msra.mxu0 %v36
    %61 = vmatprep.subr.mxu0 0.0
    %62 = vmatpush1.msra.mxu0 %v35
    %63 = vmatprep.subr.mxu0 0.0
    %64 = vmatpush1.msra.mxu0 %v34
    %65 = vmatprep.subr.mxu0 0.0
    %66 = vmatpush1.msra.mxu0 %v33
    %67 = vmatprep.subr.mxu0 0.0
    %68 = vmatpush1.msra.mxu0 %v32
    %69 = vmatprep.subr.mxu0 0.0
    %70 = vmatpush1.msra.mxu0 %v31
    %71 = vmatprep.subr.mxu0 0.0
    %72 = vmatpush1.msra.mxu0 %v30
    %73 = vmatprep.subr.mxu0 0.0
    %74 = vmatpush1.msra.mxu0 %v29
    %75 = vmatprep.subr.mxu0 0.0
    %76 = vmatpush1.msra.mxu0 %v28
    %77 = vmatprep.subr.mxu0 0.0
    %78 = vmatpush1.msra.mxu0 %v27
    %79 = vmatprep.subr.mxu0 0.0
    %80 = vmatpush2.msra.mxu0 0.0
    %81 = vmatprep.subr.mxu0 0.0
    %82 = vmatpush2.msra.mxu0 0.0
    %83 = vmatprep.subr.mxu0 0.0
    %84 = vmatpush2.msra.mxu0 0.0
    %85 = vmatprep.subr.mxu0 0.0
    %86 = vmatpush2.msra.mxu0 0.0
    %87 = vmatprep.subr.mxu0 0.0
    %88 = vmatpush2.msra.mxu0 0.0
    %89 = vmatprep.subr.mxu0 0.0
    %90 = vmatpush2.msra.mxu0 0.0
    %91 = vmatprep.subr.mxu0 0.0
    %92 = vmatpush2.msra.mxu0 0.0
    %93 = vmatprep.subr.mxu0 0.0
    %94 = vmatpush2.msra.mxu0 0.0
    %95 = vmatprep.subr.mxu0 0.0
    %96 = vmatpush2.msra.mxu0 0.0
    %97 = vmatprep.subr.mxu0 0.0
    %98 = vmatpush2.msra.mxu0 0.0
    %99 = vmatprep.subr.mxu0 0.0
    %100 = vmatpush2.msra.mxu0 0.0
    %101 = vmatprep.subr.mxu0 0.0
    %102 = vmatpush2.msra.mxu0 0.0
    %103 = vmatprep.subr.mxu0 0.0
    %104 = vmatpush2.msra.mxu0 0.0
    %105 = vmatprep.subr.mxu0 0.0
    %106 = vmatpush2.msra.mxu0 0.0
    %107 = vmatprep.subr.mxu0 0.0
    %108 = vmatpush2.msra.mxu0 0.0
    %109 = vmatprep.subr.mxu0 0.0
    %110 = vmatpush2.msra.mxu0 0.0
    %111 = vmatprep.mubr.f32.mxu0 0.0
    %112 = vmatmul.mubr.f32.gmra.mxu0 %v46
    %v113 = vpop.f32.mrf.mxu0
    %v114 = vadd.f32 0.0, %v113
    %v115 = vpop.f32.mrf.mxu0
    %116 = vdwg.mxu0
    %v117 = vmul.f32 %v114, 0.03125
    %vm118 = vcmask 31744
    %v120 = vsel %vm118, %v117, 0
    %vm122 = vcmask 1043456
    %v124 = vsel %vm122, %v43, 0
    %126 = vmatprep.subr.mxu0 0.0
    %127 = vmatpush1.msra.mxu0 0.0
    %128 = vmatprep.subr.mxu0 0.0
    %129 = vmatpush1.msra.mxu0 0.0
    %130 = vmatprep.subr.mxu0 0.0
    %131 = vmatpush1.msra.mxu0 0.0
    %132 = vmatprep.subr.mxu0 0.0
    %133 = vmatpush1.msra.mxu0 0.0
    %134 = vmatprep.subr.mxu0 0.0
    %135 = vmatpush1.msra.mxu0 0.0
    %136 = vmatprep.subr.mxu0 0.0
    %137 = vmatpush1.msra.mxu0 0.0
    %138 = vmatprep.subr.mxu0 0.0
    %139 = vmatpush1.msra.mxu0 0.0
    %140 = vmatprep.subr.mxu0 0.0
    %141 = vmatpush1.msra.mxu0 0.0
    %142 = vmatprep.subr.mxu0 0.0
    %143 = vmatpush1.msra.mxu0 0.0
    %144 = vmatprep.subr.mxu0 0.0
    %145 = vmatpush1.msra.mxu0 0.0
    %146 = vmatprep.subr.mxu0 0.0
    %147 = vmatpush1.msra.mxu0 0.0
    %148 = vmatprep.subr.mxu0 0.0
    %149 = vmatpush1.msra.mxu0 0.0
    %150 = vmatprep.subr.mxu0 0.0
    %151 = vmatpush1.msra.mxu0 0.0
    %152 = vmatprep.subr.mxu0 0.0
    %153 = vmatpush1.msra.mxu0 0.0
    %154 = vmatprep.subr.mxu0 0.0
    %155 = vmatpush1.msra.mxu0 0.0
    %156 = vmatprep.subr.mxu0 0.0
    %157 = vmatpush1.msra.mxu0 %v124
    %158 = vmatprep.subr.mxu0 0.0
    %159 = vmatpush2.msra.mxu0 0.0
    %160 = vmatprep.subr.mxu0 0.0
    %161 = vmatpush2.msra.mxu0 0.0
    %162 = vmatprep.subr.mxu0 0.0
    %163 = vmatpush2.msra.mxu0 0.0
    %164 = vmatprep.subr.mxu0 0.0
    %165 = vmatpush2.msra.mxu0 0.0
    %166 = vmatprep.subr.mxu0 0.0
    %167 = vmatpush2.msra.mxu0 0.0
    %168 = vmatprep.subr.mxu0 0.0
    %169 = vmatpush2.msra.mxu0 0.0
    %170 = vmatprep.subr.mxu0 0.0
    %171 = vmatpush2.msra.mxu0 0.0
    %172 = vmatprep.subr.mxu0 0.0
    %173 = vmatpush2.msra.mxu0 0.0
    %174 = vmatprep.subr.mxu0 0.0
    %175 = vmatpush2.msra.mxu0 0.0
    %176 = vmatprep.subr.mxu0 0.0
    %177 = vmatpush2.msra.mxu0 0.0
    %178 = vmatprep.subr.mxu0 0.0
    %179 = vmatpush2.msra.mxu0 0.0
    %180 = vmatprep.subr.mxu0 0.0
    %181 = vmatpush2.msra.mxu0 0.0
    %182 = vmatprep.subr.mxu0 0.0
    %183 = vmatpush2.msra.mxu0 0.0
    %184 = vmatprep.subr.mxu0 0.0
    %185 = vmatpush2.msra.mxu0 0.0
    %186 = vmatprep.subr.mxu0 0.0
    %187 = vmatpush2.msra.mxu0 0.0
    %188 = vmatprep.subr.mxu0 0.0
    %189 = vmatpush2.msra.mxu0 0.0
    %190 = vmatprep.mubr.f32.mxu0 0.0
    %191 = vmatmul.mubr.f32.gmra.mxu0 %v120
    %v192 = vpop.f32.mrf.mxu0
    %v193 = vadd.f32 0.0, %v192
    %v194 = vpop.f32.mrf.mxu0
    %195 = vdwg.mxu0
    %v196 = vsub.f32 %v46, %v193
    %v197 = vmul.f32 %v196, %v196
    %198 = vmatprep.subr.mxu0 0.0
    %199 = vmatpush1.msra.mxu0 %v42
    %200 = vmatprep.subr.mxu0 0.0
    %201 = vmatpush1.msra.mxu0 %v41
    %202 = vmatprep.subr.mxu0 0.0
    %203 = vmatpush1.msra.mxu0 %v40
    %204 = vmatprep.subr.mxu0 0.0
    %205 = vmatpush1.msra.mxu0 %v39
    %206 = vmatprep.subr.mxu0 0.0
    %207 = vmatpush1.msra.mxu0 %v38
    %208 = vmatprep.subr.mxu0 0.0
    %209 = vmatpush1.msra.mxu0 %v37
    %210 = vmatprep.subr.mxu0 0.0
    %211 = vmatpush1.msra.mxu0 %v36
    %212 = vmatprep.subr.mxu0 0.0
    %213 = vmatpush1.msra.mxu0 %v35
    %214 = vmatprep.subr.mxu0 0.0
    %215 = vmatpush1.msra.mxu0 %v34
    %216 = vmatprep.subr.mxu0 0.0
    %217 = vmatpush1.msra.mxu0 %v33
    %218 = vmatprep.subr.mxu0 0.0
    %219 = vmatpush1.msra.mxu0 %v32
    %220 = vmatprep.subr.mxu0 0.0
    %221 = vmatpush1.msra.mxu0 %v31
    %222 = vmatprep.subr.mxu0 0.0
    %223 = vmatpush1.msra.mxu0 %v30
    %224 = vmatprep.subr.mxu0 0.0
    %225 = vmatpush1.msra.mxu0 %v29
    %226 = vmatprep.subr.mxu0 0.0
    %227 = vmatpush1.msra.mxu0 %v28
    %228 = vmatprep.subr.mxu0 0.0
    %229 = vmatpush1.msra.mxu0 %v27
    %230 = vmatprep.subr.mxu0 0.0
    %231 = vmatpush2.msra.mxu0 0.0
    %232 = vmatprep.subr.mxu0 0.0
    %233 = vmatpush2.msra.mxu0 0.0
    %234 = vmatprep.subr.mxu0 0.0
    %235 = vmatpush2.msra.mxu0 0.0
    %236 = vmatprep.subr.mxu0 0.0
    %237 = vmatpush2.msra.mxu0 0.0
    %238 = vmatprep.subr.mxu0 0.0
    %239 = vmatpush2.msra.mxu0 0.0
    %240 = vmatprep.subr.mxu0 0.0
    %241 = vmatpush2.msra.mxu0 0.0
    %242 = vmatprep.subr.mxu0 0.0
    %243 = vmatpush2.msra.mxu0 0.0
    %244 = vmatprep.subr.mxu0 0.0
    %245 = vmatpush2.msra.mxu0 0.0
    %246 = vmatprep.subr.mxu0 0.0
    %247 = vmatpush2.msra.mxu0 0.0
    %248 = vmatprep.subr.mxu0 0.0
    %249 = vmatpush2.msra.mxu0 0.0
    %250 = vmatprep.subr.mxu0 0.0
    %251 = vmatpush2.msra.mxu0 0.0
    %252 = vmatprep.subr.mxu0 0.0
    %253 = vmatpush2.msra.mxu0 0.0
    %254 = vmatprep.subr.mxu0 0.0
    %255 = vmatpush2.msra.mxu0 0.0
    %256 = vmatprep.subr.mxu0 0.0
    %257 = vmatpush2.msra.mxu0 0.0
    %258 = vmatprep.subr.mxu0 0.0
    %259 = vmatpush2.msra.mxu0 0.0
    %260 = vmatprep.subr.mxu0 0.0
    %261 = vmatpush2.msra.mxu0 0.0
    %262 = vmatprep.mubr.f32.mxu0 0.0
    %263 = vmatmul.mubr.f32.gmra.mxu0 %v197
    %v264 = vpop.f32.mrf.mxu0
    %v265 = vadd.f32 0.0, %v264
    %v266 = vpop.f32.mrf.mxu0
    %267 = vdwg.mxu0
    %v268 = vmul.f32 %v265, 0.03125
    %v270 = vsel %vm118, %v268, 0
    %272 = vmatprep.subr.mxu0 0.0
    %273 = vmatpush1.msra.mxu0 0.0
    %274 = vmatprep.subr.mxu0 0.0
    %275 = vmatpush1.msra.mxu0 0.0
    %276 = vmatprep.subr.mxu0 0.0
    %277 = vmatpush1.msra.mxu0 0.0
    %278 = vmatprep.subr.mxu0 0.0
    %279 = vmatpush1.msra.mxu0 0.0
    %280 = vmatprep.subr.mxu0 0.0
    %281 = vmatpush1.msra.mxu0 0.0
    %282 = vmatprep.subr.mxu0 0.0
    %283 = vmatpush1.msra.mxu0 0.0
    %284 = vmatprep.subr.mxu0 0.0
    %285 = vmatpush1.msra.mxu0 0.0
    %286 = vmatprep.subr.mxu0 0.0
    %287 = vmatpush1.msra.mxu0 0.0
    %288 = vmatprep.subr.mxu0 0.0
    %289 = vmatpush1.msra.mxu0 0.0
    %290 = vmatprep.subr.mxu0 0.0
    %291 = vmatpush1.msra.mxu0 0.0
    %292 = vmatprep.subr.mxu0 0.0
    %293 = vmatpush1.msra.mxu0 0.0
    %294 = vmatprep.subr.mxu0 0.0
    %295 = vmatpush1.msra.mxu0 0.0
    %296 = vmatprep.subr.mxu0 0.0
    %297 = vmatpush1.msra.mxu0 0.0
    %298 = vmatprep.subr.mxu0 0.0
    %299 = vmatpush1.msra.mxu0 0.0
    %300 = vmatprep.subr.mxu0 0.0
    %301 = vmatpush1.msra.mxu0 0.0
    %302 = vmatprep.subr.mxu0 0.0
    %303 = vmatpush1.msra.mxu0 %v124
    %304 = vmatprep.subr.mxu0 0.0
    %305 = vmatpush2.msra.mxu0 0.0
    %306 = vmatprep.subr.mxu0 0.0
    %307 = vmatpush2.msra.mxu0 0.0
    %308 = vmatprep.subr.mxu0 0.0
    %309 = vmatpush2.msra.mxu0 0.0
    %310 = vmatprep.subr.mxu0 0.0
    %311 = vmatpush2.msra.mxu0 0.0
    %312 = vmatprep.subr.mxu0 0.0
    %313 = vmatpush2.msra.mxu0 0.0
    %314 = vmatprep.subr.mxu0 0.0
    %315 = vmatpush2.msra.mxu0 0.0
    %316 = vmatprep.subr.mxu0 0.0
    %317 = vmatpush2.msra.mxu0 0.0
    %318 = vmatprep.subr.mxu0 0.0
    %319 = vmatpush2.msra.mxu0 0.0
    %320 = vmatprep.subr.mxu0 0.0
    %321 = vmatpush2.msra.mxu0 0.0
    %322 = vmatprep.subr.mxu0 0.0
    %323 = vmatpush2.msra.mxu0 0.0
    %324 = vmatprep.subr.mxu0 0.0
    %325 = vmatpush2.msra.mxu0 0.0
    %326 = vmatprep.subr.mxu0 0.0
    %327 = vmatpush2.msra.mxu0 0.0
    %328 = vmatprep.subr.mxu0 0.0
    %329 = vmatpush2.msra.mxu0 0.0
    %330 = vmatprep.subr.mxu0 0.0
    %331 = vmatpush2.msra.mxu0 0.0
    %332 = vmatprep.subr.mxu0 0.0
    %333 = vmatpush2.msra.mxu0 0.0
    %334 = vmatprep.subr.mxu0 0.0
    %335 = vmatpush2.msra.mxu0 0.0
    %336 = vmatprep.mubr.f32.mxu0 0.0
    %337 = vmatmul.mubr.f32.gmra.mxu0 %v270
    %v338 = vpop.f32.mrf.mxu0
    %v339 = vadd.f32 1e-05, %v338
    %v340 = vpop.f32.mrf.mxu0
    %341 = vdwg.mxu0
    %v342 = vrsqrt.pop %v339
    %v343 = vmul.f32 %v196, %v342
    %v345 = vlaneseq
    %v346 = vshrl.u32 %v345, 7
    %v347 = vsub.s32 0, %v346
    %v348 = vrot.slane %v44, %v347
    %v350 = vmul.f32 %v343, %v348
    %v352 = vlaneseq
    %v353 = vshrl.u32 %v352, 7
    %v354 = vsub.s32 0, %v353
    %v355 = vrot.slane %v45, %v354
    %v357 = vadd.f32 %v350, %v355
    %v358 = vld [vmem:[%s1] sm:$0xf]
    %359 = vmatprep.subr.mxu0 0.0
    %360 = vmatpush1.msra.mxu0 %v42
    %361 = vmatprep.subr.mxu0 0.0
    %362 = vmatpush1.msra.mxu0 %v41
    %363 = vmatprep.subr.mxu0 0.0
    %364 = vmatpush1.msra.mxu0 %v40
    %365 = vmatprep.subr.mxu0 0.0
    %366 = vmatpush1.msra.mxu0 %v39
    %367 = vmatprep.subr.mxu0 0.0
    %368 = vmatpush1.msra.mxu0 %v38
    %369 = vmatprep.subr.mxu0 0.0
    %370 = vmatpush1.msra.mxu0 %v37
    %371 = vmatprep.subr.mxu0 0.0
    %372 = vmatpush1.msra.mxu0 %v36
    %373 = vmatprep.subr.mxu0 0.0
    %374 = vmatpush1.msra.mxu0 %v35
    %375 = vmatprep.subr.mxu0 0.0
    %376 = vmatpush1.msra.mxu0 %v34
    %377 = vmatprep.subr.mxu0 0.0
    %378 = vmatpush1.msra.mxu0 %v33
    %379 = vmatprep.subr.mxu0 0.0
    %380 = vmatpush1.msra.mxu0 %v32
    %381 = vmatprep.subr.mxu0 0.0
    %382 = vmatpush1.msra.mxu0 %v31
    %383 = vmatprep.subr.mxu0 0.0
    %384 = vmatpush1.msra.mxu0 %v30
    %385 = vmatprep.subr.mxu0 0.0
    %386 = vmatpush1.msra.mxu0 %v29
    %387 = vmatprep.subr.mxu0 0.0
    %388 = vmatpush1.msra.mxu0 %v28
    %389 = vmatprep.subr.mxu0 0.0
    %390 = vmatpush1.msra.mxu0 %v27
    %391 = vmatprep.subr.mxu0 0.0
    %392 = vmatpush2.msra.mxu0 0.0
    %393 = vmatprep.subr.mxu0 0.0
    %394 = vmatpush2.msra.mxu0 0.0
    %395 = vmatprep.subr.mxu0 0.0
    %396 = vmatpush2.msra.mxu0 0.0
    %397 = vmatprep.subr.mxu0 0.0
    %398 = vmatpush2.msra.mxu0 0.0
    %399 = vmatprep.subr.mxu0 0.0
    %400 = vmatpush2.msra.mxu0 0.0
    %401 = vmatprep.subr.mxu0 0.0
    %402 = vmatpush2.msra.mxu0 0.0
    %403 = vmatprep.subr.mxu0 0.0
    %404 = vmatpush2.msra.mxu0 0.0
    %405 = vmatprep.subr.mxu0 0.0
    %406 = vmatpush2.msra.mxu0 0.0
    %407 = vmatprep.subr.mxu0 0.0
    %408 = vmatpush2.msra.mxu0 0.0
    %409 = vmatprep.subr.mxu0 0.0
    %410 = vmatpush2.msra.mxu0 0.0
    %411 = vmatprep.subr.mxu0 0.0
    %412 = vmatpush2.msra.mxu0 0.0
    %413 = vmatprep.subr.mxu0 0.0
    %414 = vmatpush2.msra.mxu0 0.0
    %415 = vmatprep.subr.mxu0 0.0
    %416 = vmatpush2.msra.mxu0 0.0
    %417 = vmatprep.subr.mxu0 0.0
    %418 = vmatpush2.msra.mxu0 0.0
    %419 = vmatprep.subr.mxu0 0.0
    %420 = vmatpush2.msra.mxu0 0.0
    %421 = vmatprep.subr.mxu0 0.0
    %422 = vmatpush2.msra.mxu0 0.0
    %423 = vmatprep.mubr.f32.mxu0 0.0
    %424 = vmatmul.mubr.f32.gmra.mxu0 %v358
    %v425 = vpop.f32.mrf.mxu0
    %v426 = vadd.f32 0.0, %v425
    %v427 = vpop.f32.mrf.mxu0
    %428 = vdwg.mxu0
    %v429 = vmul.f32 %v426, 0.03125
    %v431 = vsel %vm118, %v429, 0
    %433 = vmatprep.subr.mxu0 0.0
    %434 = vmatpush1.msra.mxu0 0.0
    %435 = vmatprep.subr.mxu0 0.0
    %436 = vmatpush1.msra.mxu0 0.0
    %437 = vmatprep.subr.mxu0 0.0
    %438 = vmatpush1.msra.mxu0 0.0
    %439 = vmatprep.subr.mxu0 0.0
    %440 = vmatpush1.msra.mxu0 0.0
    %441 = vmatprep.subr.mxu0 0.0
    %442 = vmatpush1.msra.mxu0 0.0
    %443 = vmatprep.subr.mxu0 0.0
    %444 = vmatpush1.msra.mxu0 0.0
    %445 = vmatprep.subr.mxu0 0.0
    %446 = vmatpush1.msra.mxu0 0.0
    %447 = vmatprep.subr.mxu0 0.0
    %448 = vmatpush1.msra.mxu0 0.0
    %449 = vmatprep.subr.mxu0 0.0
    %450 = vmatpush1.msra.mxu0 0.0
    %451 = vmatprep.subr.mxu0 0.0
    %452 = vmatpush1.msra.mxu0 0.0
    %453 = vmatprep.subr.mxu0 0.0
    %454 = vmatpush1.msra.mxu0 0.0
    %455 = vmatprep.subr.mxu0 0.0
    %456 = vmatpush1.msra.mxu0 0.0
    %457 = vmatprep.subr.mxu0 0.0
    %458 = vmatpush1.msra.mxu0 0.0
    %459 = vmatprep.subr.mxu0 0.0
    %460 = vmatpush1.msra.mxu0 0.0
    %461 = vmatprep.subr.mxu0 0.0
    %462 = vmatpush1.msra.mxu0 0.0
    %463 = vmatprep.subr.mxu0 0.0
    %464 = vmatpush1.msra.mxu0 %v124
    %465 = vmatprep.subr.mxu0 0.0
    %466 = vmatpush2.msra.mxu0 0.0
    %467 = vmatprep.subr.mxu0 0.0
    %468 = vmatpush2.msra.mxu0 0.0
    %469 = vmatprep.subr.mxu0 0.0
    %470 = vmatpush2.msra.mxu0 0.0
    %471 = vmatprep.subr.mxu0 0.0
    %472 = vmatpush2.msra.mxu0 0.0
    %473 = vmatprep.subr.mxu0 0.0
    %474 = vmatpush2.msra.mxu0 0.0
    %475 = vmatprep.subr.mxu0 0.0
    %476 = vmatpush2.msra.mxu0 0.0
    %477 = vmatprep.subr.mxu0 0.0
    %478 = vmatpush2.msra.mxu0 0.0
    %479 = vmatprep.subr.mxu0 0.0
    %480 = vmatpush2.msra.mxu0 0.0
    %481 = vmatprep.subr.mxu0 0.0
    %482 = vmatpush2.msra.mxu0 0.0
    %483 = vmatprep.subr.mxu0 0.0
    %484 = vmatpush2.msra.mxu0 0.0
    %485 = vmatprep.subr.mxu0 0.0
    %486 = vmatpush2.msra.mxu0 0.0
    %487 = vmatprep.subr.mxu0 0.0
    %488 = vmatpush2.msra.mxu0 0.0
    %489 = vmatprep.subr.mxu0 0.0
    %490 = vmatpush2.msra.mxu0 0.0
    %491 = vmatprep.subr.mxu0 0.0
    %492 = vmatpush2.msra.mxu0 0.0
    %493 = vmatprep.subr.mxu0 0.0
    %494 = vmatpush2.msra.mxu0 0.0
    %495 = vmatprep.subr.mxu0 0.0
    %496 = vmatpush2.msra.mxu0 0.0
    %497 = vmatprep.mubr.f32.mxu0 0.0
    %498 = vmatmul.mubr.f32.gmra.mxu0 %v431
    %v499 = vpop.f32.mrf.mxu0
    %v500 = vadd.f32 0.0, %v499
    %v501 = vpop.f32.mrf.mxu0
    %502 = vdwg.mxu0
    %v503 = vsub.f32 %v358, %v500
    %v504 = vmul.f32 %v503, %v503
    %505 = vmatprep.subr.mxu0 0.0
    %506 = vmatpush1.msra.mxu0 %v42
    %507 = vmatprep.subr.mxu0 0.0
    %508 = vmatpush1.msra.mxu0 %v41
    %509 = vmatprep.subr.mxu0 0.0
    %510 = vmatpush1.msra.mxu0 %v40
    %511 = vmatprep.subr.mxu0 0.0
    %512 = vmatpush1.msra.mxu0 %v39
    %513 = vmatprep.subr.mxu0 0.0
    %514 = vmatpush1.msra.mxu0 %v38
    %515 = vmatprep.subr.mxu0 0.0
    %516 = vmatpush1.msra.mxu0 %v37
    %517 = vmatprep.subr.mxu0 0.0
    %518 = vmatpush1.msra.mxu0 %v36
    %519 = vmatprep.subr.mxu0 0.0
    %520 = vmatpush1.msra.mxu0 %v35
    %521 = vmatprep.subr.mxu0 0.0
    %522 = vmatpush1.msra.mxu0 %v34
    %523 = vmatprep.subr.mxu0 0.0
    %524 = vmatpush1.msra.mxu0 %v33
    %525 = vmatprep.subr.mxu0 0.0
    %526 = vmatpush1.msra.mxu0 %v32
    %527 = vmatprep.subr.mxu0 0.0
    %528 = vmatpush1.msra.mxu0 %v31
    %529 = vmatprep.subr.mxu0 0.0
    %530 = vmatpush1.msra.mxu0 %v30
    %531 = vmatprep.subr.mxu0 0.0
    %532 = vmatpush1.msra.mxu0 %v29
    %533 = vmatprep.subr.mxu0 0.0
    %534 = vmatpush1.msra.mxu0 %v28
    %535 = vmatprep.subr.mxu0 0.0
    %536 = vmatpush1.msra.mxu0 %v27
    %537 = vmatprep.subr.mxu0 0.0
    %538 = vmatpush2.msra.mxu0 0.0
    %539 = vmatprep.subr.mxu0 0.0
    %540 = vmatpush2.msra.mxu0 0.0
    %541 = vmatprep.subr.mxu0 0.0
    %542 = vmatpush2.msra.mxu0 0.0
    %543 = vmatprep.subr.mxu0 0.0
    %544 = vmatpush2.msra.mxu0 0.0
    %545 = vmatprep.subr.mxu0 0.0
    %546 = vmatpush2.msra.mxu0 0.0
    %547 = vmatprep.subr.mxu0 0.0
    %548 = vmatpush2.msra.mxu0 0.0
    %549 = vmatprep.subr.mxu0 0.0
    %550 = vmatpush2.msra.mxu0 0.0
    %551 = vmatprep.subr.mxu0 0.0
    %552 = vmatpush2.msra.mxu0 0.0
    %553 = vmatprep.subr.mxu0 0.0
    %554 = vmatpush2.msra.mxu0 0.0
    %555 = vmatprep.subr.mxu0 0.0
    %556 = vmatpush2.msra.mxu0 0.0
    %557 = vmatprep.subr.mxu0 0.0
    %558 = vmatpush2.msra.mxu0 0.0
    %559 = vmatprep.subr.mxu0 0.0
    %560 = vmatpush2.msra.mxu0 0.0
    %561 = vmatprep.subr.mxu0 0.0
    %562 = vmatpush2.msra.mxu0 0.0
    %563 = vmatprep.subr.mxu0 0.0
    %564 = vmatpush2.msra.mxu0 0.0
    %565 = vmatprep.subr.mxu0 0.0
    %566 = vmatpush2.msra.mxu0 0.0
    %567 = vmatprep.subr.mxu0 0.0
    %568 = vmatpush2.msra.mxu0 0.0
    %569 = vmatprep.mubr.f32.mxu0 0.0
    %570 = vmatmul.mubr.f32.gmra.mxu0 %v504
    %v571 = vpop.f32.mrf.mxu0
    %v572 = vadd.f32 0.0, %v571
    %v573 = vpop.f32.mrf.mxu0
    %574 = vdwg.mxu0
    %v575 = vmul.f32 %v572, 0.03125
    %v577 = vsel %vm118, %v575, 0
    %579 = vmatprep.subr.mxu0 0.0
    %580 = vmatpush1.msra.mxu0 0.0
    %581 = vmatprep.subr.mxu0 0.0
    %582 = vmatpush1.msra.mxu0 0.0
    %583 = vmatprep.subr.mxu0 0.0
    %584 = vmatpush1.msra.mxu0 0.0
    %585 = vmatprep.subr.mxu0 0.0
    %586 = vmatpush1.msra.mxu0 0.0
    %587 = vmatprep.subr.mxu0 0.0
    %588 = vmatpush1.msra.mxu0 0.0
    %589 = vmatprep.subr.mxu0 0.0
    %590 = vmatpush1.msra.mxu0 0.0
    %591 = vmatprep.subr.mxu0 0.0
    %592 = vmatpush1.msra.mxu0 0.0
    %593 = vmatprep.subr.mxu0 0.0
    %594 = vmatpush1.msra.mxu0 0.0
    %595 = vmatprep.subr.mxu0 0.0
    %596 = vmatpush1.msra.mxu0 0.0
    %597 = vmatprep.subr.mxu0 0.0
    %598 = vmatpush1.msra.mxu0 0.0
    %599 = vmatprep.subr.mxu0 0.0
    %600 = vmatpush1.msra.mxu0 0.0
    %601 = vmatprep.subr.mxu0 0.0
    %602 = vmatpush1.msra.mxu0 0.0
    %603 = vmatprep.subr.mxu0 0.0
    %604 = vmatpush1.msra.mxu0 0.0
    %605 = vmatprep.subr.mxu0 0.0
    %606 = vmatpush1.msra.mxu0 0.0
    %607 = vmatprep.subr.mxu0 0.0
    %608 = vmatpush1.msra.mxu0 0.0
    %609 = vmatprep.subr.mxu0 0.0
    %610 = vmatpush1.msra.mxu0 %v124
    %611 = vmatprep.subr.mxu0 0.0
    %612 = vmatpush2.msra.mxu0 0.0
    %613 = vmatprep.subr.mxu0 0.0
    %614 = vmatpush2.msra.mxu0 0.0
    %615 = vmatprep.subr.mxu0 0.0
    %616 = vmatpush2.msra.mxu0 0.0
    %617 = vmatprep.subr.mxu0 0.0
    %618 = vmatpush2.msra.mxu0 0.0
    %619 = vmatprep.subr.mxu0 0.0
    %620 = vmatpush2.msra.mxu0 0.0
    %621 = vmatprep.subr.mxu0 0.0
    %622 = vmatpush2.msra.mxu0 0.0
    %623 = vmatprep.subr.mxu0 0.0
    %624 = vmatpush2.msra.mxu0 0.0
    %625 = vmatprep.subr.mxu0 0.0
    %626 = vmatpush2.msra.mxu0 0.0
    %627 = vmatprep.subr.mxu0 0.0
    %628 = vmatpush2.msra.mxu0 0.0
    %629 = vmatprep.subr.mxu0 0.0
    %630 = vmatpush2.msra.mxu0 0.0
    %631 = vmatprep.subr.mxu0 0.0
    %632 = vmatpush2.msra.mxu0 0.0
    %633 = vmatprep.subr.mxu0 0.0
    %634 = vmatpush2.msra.mxu0 0.0
    %635 = vmatprep.subr.mxu0 0.0
    %636 = vmatpush2.msra.mxu0 0.0
    %637 = vmatprep.subr.mxu0 0.0
    %638 = vmatpush2.msra.mxu0 0.0
    %639 = vmatprep.subr.mxu0 0.0
    %640 = vmatpush2.msra.mxu0 0.0
    %641 = vmatprep.subr.mxu0 0.0
    %642 = vmatpush2.msra.mxu0 0.0
    %643 = vmatprep.mubr.f32.mxu0 0.0
    %644 = vmatmul.mubr.f32.gmra.mxu0 %v577
    %v645 = vpop.f32.mrf.mxu0
    %v646 = vadd.f32 1e-05, %v645
    %v647 = vpop.f32.mrf.mxu0
    %648 = vdwg.mxu0
    %v649 = vrsqrt.pop %v646
    %v650 = vmul.f32 %v503, %v649
    %v651 = vmul.f32 %v650, %v348
    %v652 = vadd.f32 %v651, %v355
    %653 = vst [vmem:[#allocation2] sm:$0xf] %v357
    %654 = vst [vmem:[#allocation4] sm:$0xf] %v652
    // Predicated region
    $region26: #{tpu_custom_call.1} parent=1 // pred_check
      _
    $region27: #{tpu_custom_call.1} parent=1 // pred_check_branch
      %656 = sbr.rel (0) target = $region29
    $region28: #{tpu_custom_call.1} parent=1 // pred_region
      %s658 = ssub.s32 64, 64
      %659 = vsyncadd [#allocation3], %s658
      %s661 = sshll.u32 [#allocation2], 4
      %s662 = int_to_ptr.vmem [resolvable:$true] %s661
      %664 = dma.vmem_to_hbm [thread:$0]  %s662, 64, %s6, [#allocation3]
    $region29: #{tpu_custom_call.1} parent=1 // pred_fallthru
      _
    // Predicated region
    $region30: #{tpu_custom_call.1} parent=1 // pred_check
      _
    $region31: #{tpu_custom_call.1} parent=1 // pred_check_branch
      %666 = sbr.rel (0) target = $region33
    $region32: #{tpu_custom_call.1} parent=1 // pred_region
      %s668 = ssub.s32 64, 64
      %669 = vsyncadd [#allocation5], %s668
      %s671 = sshll.u32 [#allocation4], 4
      %s672 = int_to_ptr.vmem [resolvable:$true] %s671
      %674 = dma.vmem_to_hbm [thread:$0]  %s672, 64, %s7, [#allocation5]
    $region33: #{tpu_custom_call.1} parent=1 // pred_fallthru
      _
    // Predicated region
    $region34: #{tpu_custom_call.1} parent=1 // pred_check
      _
    $region35: #{tpu_custom_call.1} parent=1 // pred_check_branch
      %676 = sbr.rel (0) target = $region37
    $region36: #{tpu_custom_call.1} parent=1 // pred_region
      %677 = dma.done [#allocation3], 64
    $region37: #{tpu_custom_call.1} parent=1 // pred_fallthru
      _
    // Predicated region
    $region38: #{tpu_custom_call.1} parent=1 // pred_check
      _
    $region39: #{tpu_custom_call.1} parent=1 // pred_check_branch
      %679 = sbr.rel (0) target = $region41
    $region40: #{tpu_custom_call.1} parent=1 // pred_region
      %680 = dma.done [#allocation5], 64
    $region41: #{tpu_custom_call.1} parent=1 // pred_fallthru
      _
    %681 = vsyncpa [#allocation3], 1
    %682 = vsyncpa [#allocation5], 1

</llo_original>
